<compile_context>
chip_gen: v6e
topology: v6e:2x2x1
jax: 0.10.0
libtpu: 0.0.40
codegen_flags: <defaults>
</compile_context>

<pallas_src>
import math

import jax
import jax.numpy as jnp
from jax.experimental import pallas as pl
from jax.experimental.pallas import tpu as pltpu


_LANE_CANDIDATES = (4096, 2048, 1024, 512, 256, 128)
_MIN_PALLAS_ELEMS = 1 << 16   # below this, the plain fused XLA gelu wins on latency
_SQRT_HALF = 1.0 / math.sqrt(2.0)


def _gelu_kernel(x_ref, o_ref):
    # Exact (erf-based) GeLU; compute in f32, store in the I/O dtype.
    x = x_ref[...].astype(jnp.float32)
    y = 0.5 * x * (1.0 + jax.lax.erf(x * _SQRT_HALF))
    o_ref[...] = y.astype(o_ref.dtype)


def _gelu_jnp(x):
    # Same math outside the kernel (tiny inputs / <128-element ragged tail).
    xf = x.astype(jnp.float32)
    return (0.5 * xf * (1.0 + jax.lax.erf(xf * _SQRT_HALF))).astype(x.dtype)


_CHIP_BUDGET_CACHE = None


def _chip_budget():
    """Return (target_block_bytes, vmem_limit_bytes) for the current TPU gen."""
    global _CHIP_BUDGET_CACHE
    if _CHIP_BUDGET_CACHE is not None:
        return _CHIP_BUDGET_CACHE
    vmem_bytes = None
    try:
        info = pltpu.get_tpu_info()
        vmem_bytes = getattr(info, "vmem_capacity_bytes", None)
    except Exception:
        vmem_bytes = None
    if vmem_bytes is None:
        vmem_bytes = 64 * 1024 * 1024  # conservative: assume v7x-sized VMEM
    if vmem_bytes >= 100 * 1024 * 1024:
        # v5e / v6e: 128 MiB physical VMEM -> big blocks, generous scoped limit.
        _CHIP_BUDGET_CACHE = (8 * 1024 * 1024, 64 * 1024 * 1024)
    else:
        # v7x: 64 MiB physical VMEM -> keep pipelined footprint <= ~32 MiB.
        _CHIP_BUDGET_CACHE = (4 * 1024 * 1024, 32 * 1024 * 1024)
    return _CHIP_BUDGET_CACHE


def _sublane_multiple(dtype):
    # (8, 128) base tile; sub-32-bit dtypes pack along sublanes.
    return max(8, 32 // jnp.dtype(dtype).itemsize)


def _pick_layout(n, dtype, target_block_bytes, min_grid_steps=8):
    """Lane-dense layout for n (a multiple of 128) -> (lane, rows, row_tile)."""
    itemsize = jnp.dtype(dtype).itemsize
    sub = _sublane_multiple(dtype)

    lane = 128
    for cand in _LANE_CANDIDATES:
        if n % cand == 0:
            lane = cand
            break
    rows = n // lane

    # Biggest block within the per-generation budget (rows a sublane multiple).
    row_tile = max(sub, (target_block_bytes // (lane * itemsize)) // sub * sub)

    # Keep >= ~min_grid_steps grid steps for mid/large arrays so v7x megacore
    # sharding balances and each core keeps its DMA pipeline full.  Large
    # arrays already have many steps, so this never shrinks their block.
    if rows > sub:
        even_tile = pl.cdiv(pl.cdiv(rows, min_grid_steps), sub) * sub
        row_tile = min(row_tile, max(sub, even_tile))

    row_tile = min(row_tile, rows)  # full extent is always a legal block dim
    return lane, rows, row_tile


def _gelu_pallas_2d(x2d, rows, lane, row_tile, vmem_limit_bytes):
    grid = (pl.cdiv(rows, row_tile),)
    return pl.pallas_call(
        _gelu_kernel,
        out_shape=jax.ShapeDtypeStruct((rows, lane), x2d.dtype),
        grid_spec=pltpu.PrefetchScalarGridSpec(
            num_scalar_prefetch=0,
            grid=grid,
            in_specs=[pl.BlockSpec((row_tile, lane), lambda i: (i, 0))],
            out_specs=pl.BlockSpec((row_tile, lane), lambda i: (i, 0)),
        ),
        compiler_params=pltpu.CompilerParams(
            dimension_semantics=("parallel",),
            vmem_limit_bytes=vmem_limit_bytes,
        ),
    )(x2d)


def gelu_pallas(x: jax.Array, *, min_pallas_elems: int = _MIN_PALLAS_ELEMS) -> jax.Array:
    """Exact GeLU via a Pallas TPU kernel. Works for any shape / float dtype."""
    orig_shape = x.shape
    n = x.size
    if n == 0:
        return x

    main_n = (n // 128) * 128
    if n < min_pallas_elems or main_n == 0:
        # pallas_call launch/step overhead dominates tiny activations.
        return _gelu_jnp(x)

    block_bytes, vmem_limit = _chip_budget()
    flat = x.reshape(-1)
    tail_n = n - main_n

    main = flat if tail_n == 0 else flat[:main_n]
    lane, rows, row_tile = _pick_layout(main_n, x.dtype, block_bytes)
    out_main = _gelu_pallas_2d(
        main.reshape(rows, lane), rows, lane, row_tile, vmem_limit
    ).reshape(-1)

    if tail_n:
        # <128-element tail handled outside the kernel (no full-array pad/slice).
        out_flat = jnp.concatenate([out_main, _gelu_jnp(flat[main_n:])])
    else:
        out_flat = out_main
    return out_flat.reshape(orig_shape)


if __name__ == "__main__":
    key = jax.random.PRNGKey(0)
    k0, k1, k2, k3 = jax.random.split(key, 4)

    # Small transformer-style activation (batch=2, seq=8, hidden=32).
    x = jax.random.normal(k0, (2, 8, 32), dtype=jnp.float32)
    y = gelu_pallas(x)                               # small-input fast path
    y_forced = gelu_pallas(x, min_pallas_elems=0)    # force the Pallas kernel
    jax.block_until_ready((y, y_forced))
    ref = _gelu_jnp(x)
    assert y.shape == x.shape and y.dtype == x.dtype
    assert jnp.allclose(y, ref, atol=1e-6, rtol=1e-5)
    assert jnp.allclose(y_forced, ref, atol=1e-6, rtol=1e-5)

    # Multi-step tiled (lane-dense, parallel grid) path, f32.
    x_big = jax.random.normal(k1, (4, 128, 1024), dtype=jnp.float32)
    y_big = gelu_pallas(x_big)
    jax.block_until_ready(y_big)
    assert jnp.allclose(y_big, _gelu_jnp(x_big), atol=1e-6, rtol=1e-5)

    # bf16 activations (bf16 through HBM, f32 compute in-kernel).
    x_bf16 = jax.random.normal(k2, (2, 128, 512), dtype=jnp.bfloat16)
    y_bf16 = gelu_pallas(x_bf16)
    jax.block_until_ready(y_bf16)
    assert y_bf16.dtype == jnp.bfloat16
    assert jnp.allclose(y_bf16.astype(jnp.float32),
                        _gelu_jnp(x_bf16).astype(jnp.float32),
                        atol=2e-2, rtol=2e-2)

    # Ragged total size (n % 128 != 0): Pallas on the aligned prefix + jnp tail.
    x_ragged = jax.random.normal(k3, (257, 513), dtype=jnp.float32)
    y_ragged = gelu_pallas(x_ragged)
    jax.block_until_ready(y_ragged)
    assert y_ragged.shape == x_ragged.shape
    assert jnp.allclose(y_ragged, _gelu_jnp(x_ragged), atol=1e-6, rtol=1e-5)

    print("KERNEL_OK")
</pallas_src>

<mosaic_0001>
module attributes {stable_mosaic.version = 11 : i64} {
  func.func @_gelu_kernel(%arg0: i32, %arg1: memref<1x512xf32, #tpu.memory_space<vmem>>, %arg2: memref<1x512xf32, #tpu.memory_space<vmem>>) attributes {dimension_semantics = [#tpu.dimension_semantics<parallel>], iteration_bounds = array<i64: 1>, scalar_prefetch = 0 : i64, scratch_operands = 0 : i64, tpu.core_type = #tpu.core_type<tc>, window_params = [{transform_indices = @transform_0, window_bounds = array<i64: 1, 512>}, {transform_indices = @transform_1, window_bounds = array<i64: 1, 512>}]} {
    %c0 = arith.constant 0 : index
    %c0_0 = arith.constant 0 : index
    %0 = vector.load %arg1[%c0, %c0_0] : memref<1x512xf32, #tpu.memory_space<vmem>>, vector<1x512xf32>
    %cst = arith.constant 5.000000e-01 : f32
    %1 = vector.broadcast %cst : f32 to vector<1x512xf32>
    %2 = arith.mulf %1, %0 : vector<1x512xf32>
    %cst_1 = arith.constant 0.707106769 : f32
    %3 = vector.broadcast %cst_1 : f32 to vector<1x512xf32>
    %4 = arith.mulf %0, %3 : vector<1x512xf32>
    %5 = math.erf %4 : vector<1x512xf32>
    %cst_2 = arith.constant 1.000000e+00 : f32
    %6 = vector.broadcast %cst_2 : f32 to vector<1x512xf32>
    %7 = arith.addf %6, %5 : vector<1x512xf32>
    %8 = arith.mulf %2, %7 : vector<1x512xf32>
    %c0_3 = arith.constant 0 : index
    %c0_4 = arith.constant 0 : index
    %9 = vector.load %arg2[%c0_3, %c0_4] : memref<1x512xf32, #tpu.memory_space<vmem>>, vector<1x512xf32>
    tpu.vector_store %arg2[%c0_3, %c0_4], %8 {strides = array<i32>} : memref<1x512xf32, #tpu.memory_space<vmem>>, vector<1x512xf32>,
    return
  }
  func.func @transform_0(%arg0: i32) -> (i32, i32) {
    %c0_i32 = arith.constant 0 : i32
    %c0_i32_0 = arith.constant 0 : i32
    return %arg0, %c0_i32 : i32, i32
  }
  func.func @transform_1(%arg0: i32) -> (i32, i32) {
    %c0_i32 = arith.constant 0 : i32
    %c0_i32_0 = arith.constant 0 : i32
    return %arg0, %c0_i32 : i32, i32
  }
}

</mosaic_0001>

<llo_original>
// kernel: tpu_custom_call.1
$region0: #{tpu_custom_call.1}
  #allocation0 [shape = 'u32[]', space=smem, size = 0x4, offset = 0x4, fixed_abs, tag = 'smem constant byte address 0x4 - core index']
  #allocation1 [shape = 'u32[144,128]{1,0:T(1,128)}', space=vmem, size = 0x12000, scoped, tag = 'internal scratch']
  %s0 = inlined_call_operand.hbm [shape: f32[1,512], index: 0, kind: input, shape index: {}]
  %s1 = inlined_call_operand.hbm [shape: f32[1,512], index: 1, kind: output, shape index: {}]
  %s2 = sld [smem:[#allocation0]]
  $region18: #{tpu_custom_call.1} parent=0
    _
  %s4 = ssub.s32 1, %s2
  %s5 = scalar_select 0, %s4, %s2
  $region1: #{tpu_custom_call.1} parent=0
    #allocation2 [shape = 'u8[2048]{0}', space=vmem, size = 0x800, scoped, tag = 'input window, operand 0, single buffered']
    #allocation3 [shape = 's32[1]{0}', space=sflag, size = 0x4, scoped, tag = 'scoped memory for tpu_custom_call.1']
    #allocation4 [shape = 's32[1]{0}', space=sflag, size = 0x4, scoped, tag = 'scoped memory for tpu_custom_call.1']
    #allocation5 [shape = 'u8[2048]{0}', space=vmem, size = 0x800, scoped, tag = 'output window, operand 0, single buffered']
    %6 = vsyncpa [#allocation3], 0
    %7 = vsyncpa [#allocation4], 0
    // Predicated region
    $region2: #{tpu_custom_call.1} parent=1 // pred_check
      _
    $region3: #{tpu_custom_call.1} parent=1 // pred_check_branch
      %9 = sbr.rel (0) target = $region5
    $region4: #{tpu_custom_call.1} parent=1 // pred_region
      %s11 = ssub.s32 64, 64
      %12 = vsyncadd [#allocation3], %s11
      %s14 = sshll.u32 [#allocation2], 4
      %s15 = int_to_ptr.vmem [resolvable:$true] %s14
      %17 = dma.hbm_to_vmem [thread:$0]  %s0, 64, %s15, [#allocation3]
    $region5: #{tpu_custom_call.1} parent=1 // pred_fallthru
      _
    // Predicated region
    $region6: #{tpu_custom_call.1} parent=1 // pred_check
      _
    $region7: #{tpu_custom_call.1} parent=1 // pred_check_branch
      %19 = sbr.rel (0) target = $region9
    $region8: #{tpu_custom_call.1} parent=1 // pred_region
      %20 = dma.done [#allocation3], 64
    $region9: #{tpu_custom_call.1} parent=1 // pred_fallthru
      _
    %v21 = vld [vmem:[#allocation2] sm:$0xf]
    %v22 = vmul.f32 %v21, 0.5
    %v23 = vmul.f32 %v21, 0.70710677
    %v24 = verf.f32.pop %v23
    %v25 = vadd.f32 %v24, 1.0
    %v26 = vmul.f32 %v22, %v25
    %v27 = vlaneseq
    %vm28 = vcmp.ge.s32.totalorder %v27, 0
    %vm29 = vcmp.lt.s32.totalorder %v27, 512
    %vm30 = vmand %vm28, %vm29
    %31 = vst.msk [vmem:[#allocation5] sm:$0xf] %vm30, %v26
    // Predicated region
    $region10: #{tpu_custom_call.1} parent=1 // pred_check
      _
    $region11: #{tpu_custom_call.1} parent=1 // pred_check_branch
      %33 = sbr.rel (0) target = $region13
    $region12: #{tpu_custom_call.1} parent=1 // pred_region
      %s35 = ssub.s32 64, 64
      %36 = vsyncadd [#allocation4], %s35
      %s38 = sshll.u32 [#allocation5], 4
      %s39 = int_to_ptr.vmem [resolvable:$true] %s38
      %41 = dma.vmem_to_hbm [thread:$0]  %s39, 64, %s1, [#allocation4]
    $region13: #{tpu_custom_call.1} parent=1 // pred_fallthru
      _
    // Predicated region
    $region14: #{tpu_custom_call.1} parent=1 // pred_check
      _
    $region15: #{tpu_custom_call.1} parent=1 // pred_check_branch
      %43 = sbr.rel (0) target = $region17
    $region16: #{tpu_custom_call.1} parent=1 // pred_region
      %44 = dma.done [#allocation4], 64
    $region17: #{tpu_custom_call.1} parent=1 // pred_fallthru
      _
    %45 = vsyncpa [#allocation3], 1
    %46 = vsyncpa [#allocation4], 1

</llo_original>
